<compile_context>
chip_gen: v5e
topology: v5e:2x2
jax: 0.10.0
libtpu: 0.0.40
codegen_flags: <defaults>
</compile_context>

<pallas_src>
import jax
import jax.numpy as jnp
from jax.experimental import pallas as pl
from jax.experimental.pallas import tpu as pltpu


def _mlp_kernel(x_ref,
                w1, b1, w2, b2, w3, b3,      # block1 (3 layers)
                w4, b4, w5, b5,              # block2 (2 layers)
                w6, b6,                      # block3 (1 layer)
                w7, b7,                      # final_fc, w7 passed as (1, H2)
                o_ref):
    h = x_ref[...].astype(jnp.float32)       # (tm, D)

    def linear_relu(h, w_ref, b_ref):
        # Matmul operands in the weight dtype (f32 or bf16); f32 accumulate,
        # bias add + ReLU always in f32.
        y = jnp.dot(h.astype(w_ref.dtype), w_ref[...],
                    preferred_element_type=jnp.float32) + b_ref[...]
        return jnp.maximum(y, 0.0)

    h = linear_relu(h, w1, b1)
    h = linear_relu(h, w2, b2)
    h = linear_relu(h, w3, b3)
    h = linear_relu(h, w4, b4)
    h = linear_relu(h, w5, b5)
    h = linear_relu(h, w6, b6)

    # Final layer (no ReLU): (1, H2) @ (H2, tm) -> (1, tm), i.e. the result is
    # already lane-dense for an unmasked store into the (1, tm) output block.
    w7v = w7[...]                                           # (1, H2)
    y = jnp.dot(w7v, h.T.astype(w7v.dtype),
                preferred_element_type=jnp.float32) + b7[...]   # (1, tm)
    o_ref[...] = y.astype(o_ref.dtype)


def multi_mlp_forward(x, params, *, tm=128, matmul_dtype=None):
    """x: (B, D) float32.

    params: list of 7 (W, b) pairs, W in (in, out) layout, b in (1, out).
    tm: batch tile (rows per grid step).  128 is a good default (full MXU rows
        on v5e, two grid steps per 256 rows so both v7x TensorCores get work).
    matmul_dtype: if set (e.g. jnp.bfloat16), matmul operands are cast to this
        dtype (f32 accumulation kept) -> fast MXU path on v6e/v7x.
    """
    B, D = x.shape
    grid = int(pl.cdiv(B, tm))
    Bp = grid * tm
    if Bp != B:
        x = jnp.pad(x, ((0, Bp - B), (0, 0)))
    x = x.astype(jnp.float32)

    n_layers = len(params)
    flat_params = []
    param_specs = []
    for li, (w, b) in enumerate(params):
        if li == n_layers - 1:
            # Final layer: pass the weight as a (1, H2) row so the kernel can
            # emit a lane-dense (1, tm) result directly.
            w = w.T
            b = b.reshape(1, 1)
        if matmul_dtype is not None:
            w = w.astype(matmul_dtype)
        b = b.astype(jnp.float32)
        param_specs.append(pl.BlockSpec(w.shape, lambda i: (0, 0)))
        param_specs.append(pl.BlockSpec(b.shape, lambda i: (0, 0)))
        flat_params.append(w)
        flat_params.append(b)

    x_spec = pl.BlockSpec((tm, D), lambda i: (i, 0))
    # Lane-dense output: global (1, Bp); each grid step writes a (1, tm) slab.
    out_spec = pl.BlockSpec((1, tm), lambda i: (0, i))

    flops = int(2 * Bp * sum(int(w.shape[0]) * int(w.shape[1]) for w, _ in params))
    param_bytes = int(sum(int(a.size) * a.dtype.itemsize for a in flat_params))
    bytes_accessed = int(Bp * D * 4 + Bp * 4 + param_bytes)
    cost = pl.CostEstimate(flops=flops, transcendentals=0,
                           bytes_accessed=bytes_accessed)

    out = pl.pallas_call(
        _mlp_kernel,
        out_shape=jax.ShapeDtypeStruct((1, Bp), jnp.float32),
        grid_spec=pltpu.PrefetchScalarGridSpec(
            num_scalar_prefetch=0,
            grid=(grid,),
            in_specs=[x_spec] + param_specs,
            out_specs=out_spec,
        ),
        compiler_params=pltpu.CompilerParams(
            dimension_semantics=("parallel",)),
        cost_estimate=cost,
    )(x, *flat_params)

    # (1, Bp) -> (B, 1), dropping the padded rows.
    return out.reshape(Bp, 1)[:B]


def init_params(key, input_dim, hidden_dims):
    """Deterministic init of the 7 Linear layers, weights in (in, out) layout."""
    h0, h1, h2 = hidden_dims
    layer_dims = [
        (input_dim, h0), (h0, h0), (h0, h0),   # block1
        (h0, h1), (h1, h1),                    # block2
        (h1, h2),                              # block3
        (h2, 1),                               # final_fc
    ]
    params = []
    for (din, dout) in layer_dims:
        key, kw, kb = jax.random.split(key, 3)
        bound = 1.0 / jnp.sqrt(jnp.float32(din))
        w = jax.random.uniform(kw, (din, dout), jnp.float32, -bound, bound)
        b = jax.random.uniform(kb, (1, dout), jnp.float32, -bound, bound)
        params.append((w, b))
    return params


def reference_forward(x, params):
    h = x
    for i, (w, b) in enumerate(params):
        h = h @ w + b
        if i < len(params) - 1:
            h = jnp.maximum(h, 0.0)
    return h


if __name__ == "__main__":
    key = jax.random.PRNGKey(0)
    k_x, k_p = jax.random.split(key)

    batch = 200              # deliberately not a multiple of tm -> exercises padding
    input_dim = 16
    hidden_dims = (32, 64, 32)

    x = jax.random.normal(k_x, (batch, input_dim), jnp.float32)
    params = init_params(k_p, input_dim, hidden_dims)
    ref = reference_forward(x, params)

    # f32 matmul path: exact parity with the reference.
    out = multi_mlp_forward(x, params, tm=128)
    out = jax.block_until_ready(out)
    assert out.shape == (batch, 1), out.shape
    assert jnp.allclose(out, ref, atol=1e-5, rtol=1e-5), "f32 mismatch vs reference"

    # bf16-operand path (fast MXU path on v6e/v7x); f32 accumulate + f32 bias/ReLU.
    out_bf16 = multi_mlp_forward(x, params, tm=128, matmul_dtype=jnp.bfloat16)
    out_bf16 = jax.block_until_ready(out_bf16)
    assert out_bf16.shape == (batch, 1), out_bf16.shape
    assert jnp.allclose(out_bf16, ref, atol=1e-1, rtol=1e-1), "bf16 mismatch vs reference"

    print("KERNEL_OK")
</pallas_src>

<mosaic_0001>
module attributes {stable_mosaic.version = 11 : i64} {
  func.func @_mlp_kernel(%arg0: i32, %arg1: memref<128x16xf32, #tpu.memory_space<vmem>>, %arg2: memref<16x32xf32, #tpu.memory_space<vmem>>, %arg3: memref<1x32xf32, #tpu.memory_space<vmem>>, %arg4: memref<32x32xf32, #tpu.memory_space<vmem>>, %arg5: memref<1x32xf32, #tpu.memory_space<vmem>>, %arg6: memref<32x32xf32, #tpu.memory_space<vmem>>, %arg7: memref<1x32xf32, #tpu.memory_space<vmem>>, %arg8: memref<32x64xf32, #tpu.memory_space<vmem>>, %arg9: memref<1x64xf32, #tpu.memory_space<vmem>>, %arg10: memref<64x64xf32, #tpu.memory_space<vmem>>, %arg11: memref<1x64xf32, #tpu.memory_space<vmem>>, %arg12: memref<64x32xf32, #tpu.memory_space<vmem>>, %arg13: memref<1x32xf32, #tpu.memory_space<vmem>>, %arg14: memref<1x32xf32, #tpu.memory_space<vmem>>, %arg15: memref<1x1xf32, #tpu.memory_space<vmem>>, %arg16: memref<1x128xf32, #tpu.memory_space<vmem>>) attributes {dimension_semantics = [#tpu.dimension_semantics<parallel>], iteration_bounds = array<i64: 2>, scalar_prefetch = 0 : i64, scratch_operands = 0 : i64, tpu.core_type = #tpu.core_type<tc>, window_params = [{transform_indices = @transform_0, window_bounds = array<i64: 128, 16>}, {pipeline_mode = #tpu.pipeline_mode<synchronous>, transform_indices = @transform_1, window_bounds = array<i64: 16, 32>}, {pipeline_mode = #tpu.pipeline_mode<synchronous>, transform_indices = @transform_2, window_bounds = array<i64: 1, 32>}, {pipeline_mode = #tpu.pipeline_mode<synchronous>, transform_indices = @transform_3, window_bounds = array<i64: 32, 32>}, {pipeline_mode = #tpu.pipeline_mode<synchronous>, transform_indices = @transform_4, window_bounds = array<i64: 1, 32>}, {pipeline_mode = #tpu.pipeline_mode<synchronous>, transform_indices = @transform_5, window_bounds = array<i64: 32, 32>}, {pipeline_mode = #tpu.pipeline_mode<synchronous>, transform_indices = @transform_6, window_bounds = array<i64: 1, 32>}, {pipeline_mode = #tpu.pipeline_mode<synchronous>, transform_indices = @transform_7, window_bounds = array<i64: 32, 64>}, {pipeline_mode = #tpu.pipeline_mode<synchronous>, transform_indices = @transform_8, window_bounds = array<i64: 1, 64>}, {pipeline_mode = #tpu.pipeline_mode<synchronous>, transform_indices = @transform_9, window_bounds = array<i64: 64, 64>}, {pipeline_mode = #tpu.pipeline_mode<synchronous>, transform_indices = @transform_10, window_bounds = array<i64: 1, 64>}, {pipeline_mode = #tpu.pipeline_mode<synchronous>, transform_indices = @transform_11, window_bounds = array<i64: 64, 32>}, {pipeline_mode = #tpu.pipeline_mode<synchronous>, transform_indices = @transform_12, window_bounds = array<i64: 1, 32>}, {pipeline_mode = #tpu.pipeline_mode<synchronous>, transform_indices = @transform_13, window_bounds = array<i64: 1, 32>}, {pipeline_mode = #tpu.pipeline_mode<synchronous>, transform_indices = @transform_14, window_bounds = array<i64: 1, 1>}, {transform_indices = @transform_15, window_bounds = array<i64: 1, 128>}]} {
    %c0 = arith.constant 0 : index
    %c0_0 = arith.constant 0 : index
    %0 = vector.load %arg1[%c0, %c0_0] : memref<128x16xf32, #tpu.memory_space<vmem>>, vector<128x16xf32>
    %c0_1 = arith.constant 0 : index
    %c0_2 = arith.constant 0 : index
    %1 = vector.load %arg2[%c0_1, %c0_2] : memref<16x32xf32, #tpu.memory_space<vmem>>, vector<16x32xf32>
    %cst = arith.constant dense<0.000000e+00> : vector<128x32xf32>
    %2 = tpu.matmul %0, %1, %cst {dimension_numbers = #tpu.dot_dimension_numbers<[1], [0], [0], [1], [0, 0, 1, 1], [], []>} : vector<128x16xf32>, vector<16x32xf32>, vector<128x32xf32> -> vector<128x32xf32>
    %c0_3 = arith.constant 0 : index
    %c0_4 = arith.constant 0 : index
    %3 = vector.load %arg3[%c0_3, %c0_4] : memref<1x32xf32, #tpu.memory_space<vmem>>, vector<1x32xf32>
    %4 = vector.broadcast %3 : vector<1x32xf32> to vector<128x32xf32>
    %5 = arith.addf %2, %4 : vector<128x32xf32>
    %cst_5 = arith.constant 0.000000e+00 : f32
    %6 = vector.broadcast %cst_5 : f32 to vector<128x32xf32>
    %7 = arith.maximumf %5, %6 : vector<128x32xf32>
    %c0_6 = arith.constant 0 : index
    %c0_7 = arith.constant 0 : index
    %8 = vector.load %arg4[%c0_6, %c0_7] : memref<32x32xf32, #tpu.memory_space<vmem>>, vector<32x32xf32>
    %cst_8 = arith.constant dense<0.000000e+00> : vector<128x32xf32>
    %9 = tpu.matmul %7, %8, %cst_8 {dimension_numbers = #tpu.dot_dimension_numbers<[1], [0], [0], [1], [0, 0, 1, 1], [], []>} : vector<128x32xf32>, vector<32x32xf32>, vector<128x32xf32> -> vector<128x32xf32>
    %c0_9 = arith.constant 0 : index
    %c0_10 = arith.constant 0 : index
    %10 = vector.load %arg5[%c0_9, %c0_10] : memref<1x32xf32, #tpu.memory_space<vmem>>, vector<1x32xf32>
    %11 = vector.broadcast %10 : vector<1x32xf32> to vector<128x32xf32>
    %12 = arith.addf %9, %11 : vector<128x32xf32>
    %cst_11 = arith.constant 0.000000e+00 : f32
    %13 = vector.broadcast %cst_11 : f32 to vector<128x32xf32>
    %14 = arith.maximumf %12, %13 : vector<128x32xf32>
    %c0_12 = arith.constant 0 : index
    %c0_13 = arith.constant 0 : index
    %15 = vector.load %arg6[%c0_12, %c0_13] : memref<32x32xf32, #tpu.memory_space<vmem>>, vector<32x32xf32>
    %cst_14 = arith.constant dense<0.000000e+00> : vector<128x32xf32>
    %16 = tpu.matmul %14, %15, %cst_14 {dimension_numbers = #tpu.dot_dimension_numbers<[1], [0], [0], [1], [0, 0, 1, 1], [], []>} : vector<128x32xf32>, vector<32x32xf32>, vector<128x32xf32> -> vector<128x32xf32>
    %c0_15 = arith.constant 0 : index
    %c0_16 = arith.constant 0 : index
    %17 = vector.load %arg7[%c0_15, %c0_16] : memref<1x32xf32, #tpu.memory_space<vmem>>, vector<1x32xf32>
    %18 = vector.broadcast %17 : vector<1x32xf32> to vector<128x32xf32>
    %19 = arith.addf %16, %18 : vector<128x32xf32>
    %cst_17 = arith.constant 0.000000e+00 : f32
    %20 = vector.broadcast %cst_17 : f32 to vector<128x32xf32>
    %21 = arith.maximumf %19, %20 : vector<128x32xf32>
    %c0_18 = arith.constant 0 : index
    %c0_19 = arith.constant 0 : index
    %22 = vector.load %arg8[%c0_18, %c0_19] : memref<32x64xf32, #tpu.memory_space<vmem>>, vector<32x64xf32>
    %cst_20 = arith.constant dense<0.000000e+00> : vector<128x64xf32>
    %23 = tpu.matmul %21, %22, %cst_20 {dimension_numbers = #tpu.dot_dimension_numbers<[1], [0], [0], [1], [0, 0, 1, 1], [], []>} : vector<128x32xf32>, vector<32x64xf32>, vector<128x64xf32> -> vector<128x64xf32>
    %c0_21 = arith.constant 0 : index
    %c0_22 = arith.constant 0 : index
    %24 = vector.load %arg9[%c0_21, %c0_22] : memref<1x64xf32, #tpu.memory_space<vmem>>, vector<1x64xf32>
    %25 = vector.broadcast %24 : vector<1x64xf32> to vector<128x64xf32>
    %26 = arith.addf %23, %25 : vector<128x64xf32>
    %cst_23 = arith.constant 0.000000e+00 : f32
    %27 = vector.broadcast %cst_23 : f32 to vector<128x64xf32>
    %28 = arith.maximumf %26, %27 : vector<128x64xf32>
    %c0_24 = arith.constant 0 : index
    %c0_25 = arith.constant 0 : index
    %29 = vector.load %arg10[%c0_24, %c0_25] : memref<64x64xf32, #tpu.memory_space<vmem>>, vector<64x64xf32>
    %cst_26 = arith.constant dense<0.000000e+00> : vector<128x64xf32>
    %30 = tpu.matmul %28, %29, %cst_26 {dimension_numbers = #tpu.dot_dimension_numbers<[1], [0], [0], [1], [0, 0, 1, 1], [], []>} : vector<128x64xf32>, vector<64x64xf32>, vector<128x64xf32> -> vector<128x64xf32>
    %c0_27 = arith.constant 0 : index
    %c0_28 = arith.constant 0 : index
    %31 = vector.load %arg11[%c0_27, %c0_28] : memref<1x64xf32, #tpu.memory_space<vmem>>, vector<1x64xf32>
    %32 = vector.broadcast %31 : vector<1x64xf32> to vector<128x64xf32>
    %33 = arith.addf %30, %32 : vector<128x64xf32>
    %cst_29 = arith.constant 0.000000e+00 : f32
    %34 = vector.broadcast %cst_29 : f32 to vector<128x64xf32>
    %35 = arith.maximumf %33, %34 : vector<128x64xf32>
    %c0_30 = arith.constant 0 : index
    %c0_31 = arith.constant 0 : index
    %36 = vector.load %arg12[%c0_30, %c0_31] : memref<64x32xf32, #tpu.memory_space<vmem>>, vector<64x32xf32>
    %cst_32 = arith.constant dense<0.000000e+00> : vector<128x32xf32>
    %37 = tpu.matmul %35, %36, %cst_32 {dimension_numbers = #tpu.dot_dimension_numbers<[1], [0], [0], [1], [0, 0, 1, 1], [], []>} : vector<128x64xf32>, vector<64x32xf32>, vector<128x32xf32> -> vector<128x32xf32>
    %c0_33 = arith.constant 0 : index
    %c0_34 = arith.constant 0 : index
    %38 = vector.load %arg13[%c0_33, %c0_34] : memref<1x32xf32, #tpu.memory_space<vmem>>, vector<1x32xf32>
    %39 = vector.broadcast %38 : vector<1x32xf32> to vector<128x32xf32>
    %40 = arith.addf %37, %39 : vector<128x32xf32>
    %cst_35 = arith.constant 0.000000e+00 : f32
    %41 = vector.broadcast %cst_35 : f32 to vector<128x32xf32>
    %42 = arith.maximumf %40, %41 : vector<128x32xf32>
    %c0_36 = arith.constant 0 : index
    %c0_37 = arith.constant 0 : index
    %43 = vector.load %arg14[%c0_36, %c0_37] : memref<1x32xf32, #tpu.memory_space<vmem>>, vector<1x32xf32>
    %44 = tpu.transpose %42, [1, 0] : vector<128x32xf32> -> vector<32x128xf32>
    %cst_38 = arith.constant dense<0.000000e+00> : vector<1x128xf32>
    %45 = tpu.matmul %43, %44, %cst_38 {dimension_numbers = #tpu.dot_dimension_numbers<[1], [0], [0], [1], [0, 0, 1, 1], [], []>} : vector<1x32xf32>, vector<32x128xf32>, vector<1x128xf32> -> vector<1x128xf32>
    %c0_39 = arith.constant 0 : index
    %c0_40 = arith.constant 0 : index
    %46 = vector.load %arg15[%c0_39, %c0_40] : memref<1x1xf32, #tpu.memory_space<vmem>>, vector<1x1xf32>
    %47 = vector.broadcast %46 : vector<1x1xf32> to vector<1x128xf32>
    %48 = arith.addf %45, %47 : vector<1x128xf32>
    %c0_41 = arith.constant 0 : index
    %c0_42 = arith.constant 0 : index
    %49 = vector.load %arg16[%c0_41, %c0_42] : memref<1x128xf32, #tpu.memory_space<vmem>>, vector<1x128xf32>
    tpu.vector_store %arg16[%c0_41, %c0_42], %48 {strides = array<i32>} : memref<1x128xf32, #tpu.memory_space<vmem>>, vector<1x128xf32>,
    return
  }
  func.func @transform_0(%arg0: i32) -> (i32, i32) {
    %c0_i32 = arith.constant 0 : i32
    %c0_i32_0 = arith.constant 0 : i32
    return %arg0, %c0_i32 : i32, i32
  }
  func.func @transform_1(%arg0: i32) -> (i32, i32) {
    %c0_i32 = arith.constant 0 : i32
    %c0_i32_0 = arith.constant 0 : i32
    %c0_i32_1 = arith.constant 0 : i32
    return %c0_i32, %c0_i32_0 : i32, i32
  }
  func.func @transform_2(%arg0: i32) -> (i32, i32) {
    %c0_i32 = arith.constant 0 : i32
    %c0_i32_0 = arith.constant 0 : i32
    %c0_i32_1 = arith.constant 0 : i32
    return %c0_i32, %c0_i32_0 : i32, i32
  }
  func.func @transform_3(%arg0: i32) -> (i32, i32) {
    %c0_i32 = arith.constant 0 : i32
    %c0_i32_0 = arith.constant 0 : i32
    %c0_i32_1 = arith.constant 0 : i32
    return %c0_i32, %c0_i32_0 : i32, i32
  }
  func.func @transform_4(%arg0: i32) -> (i32, i32) {
    %c0_i32 = arith.constant 0 : i32
    %c0_i32_0 = arith.constant 0 : i32
    %c0_i32_1 = arith.constant 0 : i32
    return %c0_i32, %c0_i32_0 : i32, i32
  }
  func.func @transform_5(%arg0: i32) -> (i32, i32) {
    %c0_i32 = arith.constant 0 : i32
    %c0_i32_0 = arith.constant 0 : i32
    %c0_i32_1 = arith.constant 0 : i32
    return %c0_i32, %c0_i32_0 : i32, i32
  }
  func.func @transform_6(%arg0: i32) -> (i32, i32) {
    %c0_i32 = arith.constant 0 : i32
    %c0_i32_0 = arith.constant 0 : i32
    %c0_i32_1 = arith.constant 0 : i32
    return %c0_i32, %c0_i32_0 : i32, i32
  }
  func.func @transform_7(%arg0: i32) -> (i32, i32) {
    %c0_i32 = arith.constant 0 : i32
    %c0_i32_0 = arith.constant 0 : i32
    %c0_i32_1 = arith.constant 0 : i32
    return %c0_i32, %c0_i32_0 : i32, i32
  }
  func.func @transform_8(%arg0: i32) -> (i32, i32) {
    %c0_i32 = arith.constant 0 : i32
    %c0_i32_0 = arith.constant 0 : i32
    %c0_i32_1 = arith.constant 0 : i32
    return %c0_i32, %c0_i32_0 : i32, i32
  }
  func.func @transform_9(%arg0: i32) -> (i32, i32) {
    %c0_i32 = arith.constant 0 : i32
    %c0_i32_0 = arith.constant 0 : i32
    %c0_i32_1 = arith.constant 0 : i32
    return %c0_i32, %c0_i32_0 : i32, i32
  }
  func.func @transform_10(%arg0: i32) -> (i32, i32) {
    %c0_i32 = arith.constant 0 : i32
    %c0_i32_0 = arith.constant 0 : i32
    %c0_i32_1 = arith.constant 0 : i32
    return %c0_i32, %c0_i32_0 : i32, i32
  }
  func.func @transform_11(%arg0: i32) -> (i32, i32) {
    %c0_i32 = arith.constant 0 : i32
    %c0_i32_0 = arith.constant 0 : i32
    %c0_i32_1 = arith.constant 0 : i32
    return %c0_i32, %c0_i32_0 : i32, i32
  }
  func.func @transform_12(%arg0: i32) -> (i32, i32) {
    %c0_i32 = arith.constant 0 : i32
    %c0_i32_0 = arith.constant 0 : i32
    %c0_i32_1 = arith.constant 0 : i32
    return %c0_i32, %c0_i32_0 : i32, i32
  }
  func.func @transform_13(%arg0: i32) -> (i32, i32) {
    %c0_i32 = arith.constant 0 : i32
    %c0_i32_0 = arith.constant 0 : i32
    %c0_i32_1 = arith.constant 0 : i32
    return %c0_i32, %c0_i32_0 : i32, i32
  }
  func.func @transform_14(%arg0: i32) -> (i32, i32) {
    %c0_i32 = arith.constant 0 : i32
    %c0_i32_0 = arith.constant 0 : i32
    %c0_i32_1 = arith.constant 0 : i32
    return %c0_i32, %c0_i32_0 : i32, i32
  }
  func.func @transform_15(%arg0: i32) -> (i32, i32) {
    %c0_i32 = arith.constant 0 : i32
    %c0_i32_0 = arith.constant 0 : i32
    return %c0_i32, %arg0 : i32, i32
  }
}

</mosaic_0001>

<llo_original>
// kernel: tpu_custom_call.1
$region0: #{tpu_custom_call.1}
  #allocation0 [shape = 'u32[]', space=smem, size = 0x4, offset = 0x4, fixed_abs, tag = 'smem constant byte address 0x4 - core index']
  #allocation1 [shape = 'u32[72,128]{1,0:T(1,128)}', space=vmem, size = 0x9000, scoped, tag = 'internal scratch']
  #allocation2 [shape = 'f32[1,1]{1,0:T(1,128)S(1)}', space=vmem, size = 0x200, scoped, tag = 'scoped memory for tpu_custom_call.1']
  %s0 = inlined_call_operand.vmem [shape: f32[256,16], index: 0, kind: input, shape index: {}]
  %s1 = inlined_call_operand.vmem [shape: f32[16,32], index: 1, kind: input, shape index: {}]
  %s2 = inlined_call_operand.vmem [shape: f32[1,32], index: 2, kind: input, shape index: {}]
  %s3 = inlined_call_operand.vmem [shape: f32[32,32], index: 3, kind: input, shape index: {}]
  %s4 = inlined_call_operand.vmem [shape: f32[1,32], index: 4, kind: input, shape index: {}]
  %s5 = inlined_call_operand.vmem [shape: f32[32,32], index: 5, kind: input, shape index: {}]
  %s6 = inlined_call_operand.vmem [shape: f32[1,32], index: 6, kind: input, shape index: {}]
  %s7 = inlined_call_operand.vmem [shape: f32[32,64], index: 7, kind: input, shape index: {}]
  %s8 = inlined_call_operand.vmem [shape: f32[1,64], index: 8, kind: input, shape index: {}]
  %s9 = inlined_call_operand.vmem [shape: f32[64,64], index: 9, kind: input, shape index: {}]
  %s10 = inlined_call_operand.vmem [shape: f32[1,64], index: 10, kind: input, shape index: {}]
  %s11 = inlined_call_operand.vmem [shape: f32[64,32], index: 11, kind: input, shape index: {}]
  %s12 = inlined_call_operand.vmem [shape: f32[1,32], index: 12, kind: input, shape index: {}]
  %s13 = inlined_call_operand.vmem [shape: f32[1,32], index: 13, kind: input, shape index: {}]
  %s14 = inlined_call_operand.<no memory space> [shape: f32[1,1], index: 14, kind: input, shape index: {}]
  %s15 = inlined_call_operand.hbm [shape: f32[1,256], index: 15, kind: output, shape index: {}]
  %s16 = sld [smem:[#allocation0]]
  $region93: #{tpu_custom_call.1} parent=0
    _
  %s18 = ssub.s32 1, %s16
  %s19 = scalar_select 0, %s18, %s16
  %v20 = vstv %s14
  %21 = vst [vmem:[#allocation2] sm:$0x1] %v20
  $region1: #{tpu_custom_call.1} parent=0
    #allocation3 [shape = 'u8[1024]{0}', space=vmem, size = 0x400, scoped, tag = 'output window, operand 0']
    #allocation4 [shape = 's32[2]{0}', space=sflag, size = 0x8, scoped, tag = 'scoped memory for tpu_custom_call.1']
    %22 = vsyncpa [#allocation4], 0
    %s23 = scalar_lea.sflag [#allocation4], 1
    %24 = vsyncpa %s23, 0
    loop: start=0, step=1, limit=4
    $region2: #{tpu_custom_call.1} parent=1 // loop_pre_header
      _
    $region3: #{tpu_custom_call.1} parent=1 // loop_header
      %s26 = sphi 0, %s30
      %p27 = scmp.ge.s32.totalorder %s26, 4
      %s36 = sphi 0, %s38
      %s39 = sphi 0, %s36
      %s40 = sphi 0, %s39
      %s56 = sphi 0, %s40
      %s60 = sphi 0, %s60
      %s62 = sphi 0, %s60
      %s63 = sphi 0, %s62
      %s77 = sphi 0, %s63
      %s81 = sphi 0, %s81
      %s83 = sphi 0, %s81
      %s84 = sphi 0, %s83
      %s98 = sphi 0, %s84
      %s102 = sphi 0, %s102
      %s104 = sphi 0, %s102
      %s105 = sphi 0, %s104
      %s119 = sphi 0, %s105
      %s123 = sphi 0, %s123
      %s125 = sphi 0, %s123
      %s126 = sphi 0, %s125
      %s140 = sphi 0, %s126
      %s144 = sphi 0, %s144
      %s146 = sphi 0, %s144
      %s147 = sphi 0, %s146
      %s161 = sphi 0, %s147
      %s165 = sphi 0, %s165
      %s167 = sphi 0, %s165
      %s168 = sphi 0, %s167
      %s182 = sphi 0, %s168
      %s186 = sphi 0, %s186
      %s188 = sphi 0, %s186
      %s189 = sphi 0, %s188
      %s203 = sphi 0, %s189
      %s207 = sphi 0, %s207
      %s209 = sphi 0, %s207
      %s210 = sphi 0, %s209
      %s224 = sphi 0, %s210
      %s228 = sphi 0, %s228
      %s230 = sphi 0, %s228
      %s231 = sphi 0, %s230
      %s245 = sphi 0, %s231
      %s249 = sphi 0, %s249
      %s251 = sphi 0, %s249
      %s252 = sphi 0, %s251
      %s266 = sphi 0, %s252
      %s270 = sphi 0, %s270
      %s272 = sphi 0, %s270
      %s273 = sphi 0, %s272
      %s287 = sphi 0, %s273
      %s291 = sphi 0, %s291
      %s293 = sphi 0, %s291
      %s294 = sphi 0, %s293
      %s308 = sphi 0, %s294
      %s312 = sphi 0, %s312
      %s314 = sphi 0, %s312
      %s315 = sphi 0, %s314
      %s329 = sphi 0, %s315
      %s333 = sphi 0, %s333
      %s335 = sphi 0, %s333
      %s336 = sphi 0, %s335
      %s350 = sphi 0, %s336
      %s356 = sphi 0, %s358
      %s359 = sphi 0, %s356
      %s360 = sphi 0, %s359
      %s376 = sphi 0, %s360
    $region4: #{tpu_custom_call.1} parent=1 // loop_header_branch
      %29 = sbr.rel (%p27) target = $region8
    $region5: #{tpu_custom_call.1} parent=1 // loop_body
      %s31 = ssub.s32 %s26, 1
      %s32 = ssub.s32 %s26, 2
      %s33 = sadd.s32 %s26, 1
      %s34 = ssub.s32 %s26, %s33
      %p35 = scmp.eq.s32.totalorder %s34, 0
      %s37 = sadd.s32 %s36, 1
      %s38 = scalar_select %p35, %s36, %s37
      %p41 = pneg %p35
      %p42 = scmp.eq.s32.totalorder %s26, 1
      %p43 = por %p41, %p42
      %p44 = scmp.ne.s32.totalorder %s36, %s39
      %p45 = scmp.eq.s32.totalorder %s26, 0
      %p46 = por %p44, %p45
      %p47 = scmp.ne.s32.totalorder %s36, %s39
      %p48 = scmp.eq.s32.totalorder %s31, 1
      %p49 = por %p47, %p48
      %p50 = scmp.ne.s32.totalorder %s39, %s40
      %p51 = scmp.eq.s32.totalorder %s31, 0
      %p52 = por %p50, %p51
      %p53 = scmp.ne.s32.totalorder %s39, %s40
      %p54 = scmp.eq.s32.totalorder %s32, 1
      %p55 = por %p53, %p54
      %p57 = scmp.ne.s32.totalorder %s40, %s56
      %p58 = scmp.eq.s32.totalorder %s32, 0
      %p59 = por %p57, %p58
      %s61 = sadd.s32 %s60, 1
      %p64 = scmp.eq.s32.totalorder %s26, 1
      %p65 = scmp.ne.s32.totalorder %s60, %s62
      %p66 = scmp.eq.s32.totalorder %s26, 0
      %p67 = por %p65, %p66
      %p68 = scmp.ne.s32.totalorder %s60, %s62
      %p69 = scmp.eq.s32.totalorder %s31, 1
      %p70 = por %p68, %p69
      %p71 = scmp.ne.s32.totalorder %s62, %s63
      %p72 = scmp.eq.s32.totalorder %s31, 0
      %p73 = por %p71, %p72
      %p74 = scmp.ne.s32.totalorder %s62, %s63
      %p75 = scmp.eq.s32.totalorder %s32, 1
      %p76 = por %p74, %p75
      %p78 = scmp.ne.s32.totalorder %s63, %s77
      %p79 = scmp.eq.s32.totalorder %s32, 0
      %p80 = por %p78, %p79
      %s82 = sadd.s32 %s81, 1
      %p85 = scmp.eq.s32.totalorder %s26, 1
      %p86 = scmp.ne.s32.totalorder %s81, %s83
      %p87 = scmp.eq.s32.totalorder %s26, 0
      %p88 = por %p86, %p87
      %p89 = scmp.ne.s32.totalorder %s81, %s83
      %p90 = scmp.eq.s32.totalorder %s31, 1
      %p91 = por %p89, %p90
      %p92 = scmp.ne.s32.totalorder %s83, %s84
      %p93 = scmp.eq.s32.totalorder %s31, 0
      %p94 = por %p92, %p93
      %p95 = scmp.ne.s32.totalorder %s83, %s84
      %p96 = scmp.eq.s32.totalorder %s32, 1
      %p97 = por %p95, %p96
      %p99 = scmp.ne.s32.totalorder %s84, %s98
      %p100 = scmp.eq.s32.totalorder %s32, 0
      %p101 = por %p99, %p100
      %s103 = sadd.s32 %s102, 1
      %p106 = scmp.eq.s32.totalorder %s26, 1
      %p107 = scmp.ne.s32.totalorder %s102, %s104
      %p108 = scmp.eq.s32.totalorder %s26, 0
      %p109 = por %p107, %p108
      %p110 = scmp.ne.s32.totalorder %s102, %s104
      %p111 = scmp.eq.s32.totalorder %s31, 1
      %p112 = por %p110, %p111
      %p113 = scmp.ne.s32.totalorder %s104, %s105
      %p114 = scmp.eq.s32.totalorder %s31, 0
      %p115 = por %p113, %p114
      %p116 = scmp.ne.s32.totalorder %s104, %s105
      %p117 = scmp.eq.s32.totalorder %s32, 1
      %p118 = por %p116, %p117
      %p120 = scmp.ne.s32.totalorder %s105, %s119
      %p121 = scmp.eq.s32.totalorder %s32, 0
      %p122 = por %p120, %p121
      %s124 = sadd.s32 %s123, 1
      %p127 = scmp.eq.s32.totalorder %s26, 1
      %p128 = scmp.ne.s32.totalorder %s123, %s125
      %p129 = scmp.eq.s32.totalorder %s26, 0
      %p130 = por %p128, %p129
      %p131 = scmp.ne.s32.totalorder %s123, %s125
      %p132 = scmp.eq.s32.totalorder %s31, 1
      %p133 = por %p131, %p132
      %p134 = scmp.ne.s32.totalorder %s125, %s126
      %p135 = scmp.eq.s32.totalorder %s31, 0
      %p136 = por %p134, %p135
      %p137 = scmp.ne.s32.totalorder %s125, %s126
      %p138 = scmp.eq.s32.totalorder %s32, 1
      %p139 = por %p137, %p138
      %p141 = scmp.ne.s32.totalorder %s126, %s140
      %p142 = scmp.eq.s32.totalorder %s32, 0
      %p143 = por %p141, %p142
      %s145 = sadd.s32 %s144, 1
      %p148 = scmp.eq.s32.totalorder %s26, 1
      %p149 = scmp.ne.s32.totalorder %s144, %s146
      %p150 = scmp.eq.s32.totalorder %s26, 0
      %p151 = por %p149, %p150
      %p152 = scmp.ne.s32.totalorder %s144, %s146
      %p153 = scmp.eq.s32.totalorder %s31, 1
      %p154 = por %p152, %p153
      %p155 = scmp.ne.s32.totalorder %s146, %s147
      %p156 = scmp.eq.s32.totalorder %s31, 0
      %p157 = por %p155, %p156
      %p158 = scmp.ne.s32.totalorder %s146, %s147
      %p159 = scmp.eq.s32.totalorder %s32, 1
      %p160 = por %p158, %p159
      %p162 = scmp.ne.s32.totalorder %s147, %s161
      %p163 = scmp.eq.s32.totalorder %s32, 0
      %p164 = por %p162, %p163
      %s166 = sadd.s32 %s165, 1
      %p169 = scmp.eq.s32.totalorder %s26, 1
      %p170 = scmp.ne.s32.totalorder %s165, %s167
      %p171 = scmp.eq.s32.totalorder %s26, 0
      %p172 = por %p170, %p171
      %p173 = scmp.ne.s32.totalorder %s165, %s167
      %p174 = scmp.eq.s32.totalorder %s31, 1
      %p175 = por %p173, %p174
      %p176 = scmp.ne.s32.totalorder %s167, %s168
      %p177 = scmp.eq.s32.totalorder %s31, 0
      %p178 = por %p176, %p177
      %p179 = scmp.ne.s32.totalorder %s167, %s168
      %p180 = scmp.eq.s32.totalorder %s32, 1
      %p181 = por %p179, %p180
      %p183 = scmp.ne.s32.totalorder %s168, %s182
      %p184 = scmp.eq.s32.totalorder %s32, 0
      %p185 = por %p183, %p184
      %s187 = sadd.s32 %s186, 1
      %p190 = scmp.eq.s32.totalorder %s26, 1
      %p191 = scmp.ne.s32.totalorder %s186, %s188
      %p192 = scmp.eq.s32.totalorder %s26, 0
      %p193 = por %p191, %p192
      %p194 = scmp.ne.s32.totalorder %s186, %s188
      %p195 = scmp.eq.s32.totalorder %s31, 1
      %p196 = por %p194, %p195
      %p197 = scmp.ne.s32.totalorder %s188, %s189
      %p198 = scmp.eq.s32.totalorder %s31, 0
      %p199 = por %p197, %p198
      %p200 = scmp.ne.s32.totalorder %s188, %s189
      %p201 = scmp.eq.s32.totalorder %s32, 1
      %p202 = por %p200, %p201
      %p204 = scmp.ne.s32.totalorder %s189, %s203
      %p205 = scmp.eq.s32.totalorder %s32, 0
      %p206 = por %p204, %p205
      %s208 = sadd.s32 %s207, 1
      %p211 = scmp.eq.s32.totalorder %s26, 1
      %p212 = scmp.ne.s32.totalorder %s207, %s209
      %p213 = scmp.eq.s32.totalorder %s26, 0
      %p214 = por %p212, %p213
      %p215 = scmp.ne.s32.totalorder %s207, %s209
      %p216 = scmp.eq.s32.totalorder %s31, 1
      %p217 = por %p215, %p216
      %p218 = scmp.ne.s32.totalorder %s209, %s210
      %p219 = scmp.eq.s32.totalorder %s31, 0
      %p220 = por %p218, %p219
      %p221 = scmp.ne.s32.totalorder %s209, %s210
      %p222 = scmp.eq.s32.totalorder %s32, 1
      %p223 = por %p221, %p222
      %p225 = scmp.ne.s32.totalorder %s210, %s224
      %p226 = scmp.eq.s32.totalorder %s32, 0
      %p227 = por %p225, %p226
      %s229 = sadd.s32 %s228, 1
      %p232 = scmp.eq.s32.totalorder %s26, 1
      %p233 = scmp.ne.s32.totalorder %s228, %s230
      %p234 = scmp.eq.s32.totalorder %s26, 0
      %p235 = por %p233, %p234
      %p236 = scmp.ne.s32.totalorder %s228, %s230
      %p237 = scmp.eq.s32.totalorder %s31, 1
      %p238 = por %p236, %p237
      %p239 = scmp.ne.s32.totalorder %s230, %s231
      %p240 = scmp.eq.s32.totalorder %s31, 0
      %p241 = por %p239, %p240
      %p242 = scmp.ne.s32.totalorder %s230, %s231
      %p243 = scmp.eq.s32.totalorder %s32, 1
      %p244 = por %p242, %p243
      %p246 = scmp.ne.s32.totalorder %s231, %s245
      %p247 = scmp.eq.s32.totalorder %s32, 0
      %p248 = por %p246, %p247
      %s250 = sadd.s32 %s249, 1
      %p253 = scmp.eq.s32.totalorder %s26, 1
      %p254 = scmp.ne.s32.totalorder %s249, %s251
      %p255 = scmp.eq.s32.totalorder %s26, 0
      %p256 = por %p254, %p255
      %p257 = scmp.ne.s32.totalorder %s249, %s251
      %p258 = scmp.eq.s32.totalorder %s31, 1
      %p259 = por %p257, %p258
      %p260 = scmp.ne.s32.totalorder %s251, %s252
      %p261 = scmp.eq.s32.totalorder %s31, 0
      %p262 = por %p260, %p261
      %p263 = scmp.ne.s32.totalorder %s251, %s252
      %p264 = scmp.eq.s32.totalorder %s32, 1
      %p265 = por %p263, %p264
      %p267 = scmp.ne.s32.totalorder %s252, %s266
      %p268 = scmp.eq.s32.totalorder %s32, 0
      %p269 = por %p267, %p268
      %s271 = sadd.s32 %s270, 1
      %p274 = scmp.eq.s32.totalorder %s26, 1
      %p275 = scmp.ne.s32.totalorder %s270, %s272
      %p276 = scmp.eq.s32.totalorder %s26, 0
      %p277 = por %p275, %p276
      %p278 = scmp.ne.s32.totalorder %s270, %s272
      %p279 = scmp.eq.s32.totalorder %s31, 1
      %p280 = por %p278, %p279
      %p281 = scmp.ne.s32.totalorder %s272, %s273
      %p282 = scmp.eq.s32.totalorder %s31, 0
      %p283 = por %p281, %p282
      %p284 = scmp.ne.s32.totalorder %s272, %s273
      %p285 = scmp.eq.s32.totalorder %s32, 1
      %p286 = por %p284, %p285
      %p288 = scmp.ne.s32.totalorder %s273, %s287
      %p289 = scmp.eq.s32.totalorder %s32, 0
      %p290 = por %p288, %p289
      %s292 = sadd.s32 %s291, 1
      %p295 = scmp.eq.s32.totalorder %s26, 1
      %p296 = scmp.ne.s32.totalorder %s291, %s293
      %p297 = scmp.eq.s32.totalorder %s26, 0
      %p298 = por %p296, %p297
      %p299 = scmp.ne.s32.totalorder %s291, %s293
      %p300 = scmp.eq.s32.totalorder %s31, 1
      %p301 = por %p299, %p300
      %p302 = scmp.ne.s32.totalorder %s293, %s294
      %p303 = scmp.eq.s32.totalorder %s31, 0
      %p304 = por %p302, %p303
      %p305 = scmp.ne.s32.totalorder %s293, %s294
      %p306 = scmp.eq.s32.totalorder %s32, 1
      %p307 = por %p305, %p306
      %p309 = scmp.ne.s32.totalorder %s294, %s308
      %p310 = scmp.eq.s32.totalorder %s32, 0
      %p311 = por %p309, %p310
      %s313 = sadd.s32 %s312, 1
      %p316 = scmp.eq.s32.totalorder %s26, 1
      %p317 = scmp.ne.s32.totalorder %s312, %s314
      %p318 = scmp.eq.s32.totalorder %s26, 0
      %p319 = por %p317, %p318
      %p320 = scmp.ne.s32.totalorder %s312, %s314
      %p321 = scmp.eq.s32.totalorder %s31, 1
      %p322 = por %p320, %p321
      %p323 = scmp.ne.s32.totalorder %s314, %s315
      %p324 = scmp.eq.s32.totalorder %s31, 0
      %p325 = por %p323, %p324
      %p326 = scmp.ne.s32.totalorder %s314, %s315
      %p327 = scmp.eq.s32.totalorder %s32, 1
      %p328 = por %p326, %p327
      %p330 = scmp.ne.s32.totalorder %s315, %s329
      %p331 = scmp.eq.s32.totalorder %s32, 0
      %p332 = por %p330, %p331
      %s334 = sadd.s32 %s333, 1
      %p337 = scmp.eq.s32.totalorder %s26, 1
      %p338 = scmp.ne.s32.totalorder %s333, %s335
      %p339 = scmp.eq.s32.totalorder %s26, 0
      %p340 = por %p338, %p339
      %p341 = scmp.ne.s32.totalorder %s333, %s335
      %p342 = scmp.eq.s32.totalorder %s31, 1
      %p343 = por %p341, %p342
      %p344 = scmp.ne.s32.totalorder %s335, %s336
      %p345 = scmp.eq.s32.totalorder %s31, 0
      %p346 = por %p344, %p345
      %p347 = scmp.ne.s32.totalorder %s335, %s336
      %p348 = scmp.eq.s32.totalorder %s32, 1
      %p349 = por %p347, %p348
      %p351 = scmp.ne.s32.totalorder %s336, %s350
      %p352 = scmp.eq.s32.totalorder %s32, 0
      %p353 = por %p351, %p352
      %s354 = ssub.s32 %s26, %s33
      %p355 = scmp.eq.s32.totalorder %s354, 0
      %s357 = sadd.s32 %s356, 1
      %s358 = scalar_select %p355, %s356, %s357
      %p361 = pneg %p355
      %p362 = scmp.eq.s32.totalorder %s26, 1
      %p363 = por %p361, %p362
      %p364 = scmp.ne.s32.totalorder %s356, %s359
      %p365 = scmp.eq.s32.totalorder %s26, 0
      %p366 = por %p364, %p365
      %p367 = scmp.ne.s32.totalorder %s356, %s359
      %p368 = scmp.eq.s32.totalorder %s31, 1
      %p369 = por %p367, %p368
      %p370 = scmp.ne.s32.totalorder %s359, %s360
      %p371 = scmp.eq.s32.totalorder %s31, 0
      %p372 = por %p370, %p371
      %p373 = scmp.ne.s32.totalorder %s359, %s360
      %p374 = scmp.eq.s32.totalorder %s32, 1
      %p375 = por %p373, %p374
      %p377 = scmp.ne.s32.totalorder %s360, %s376
      %p378 = scmp.eq.s32.totalorder %s32, 0
      %p379 = por %p377, %p378
      %p380 = scmp.le.s32.totalorder 1, %s26
      %p381 = scmp.lt.s32.totalorder %s26, 3
      %p382 = pnand %p380, %p381
      %p383 = pneg %p382
      // Predicated region
      $region9: #{tpu_custom_call.1} parent=5 // pred_check
        _
      $region10: #{tpu_custom_call.1} parent=5 // pred_check_branch
        %385 = sbr.rel (%p382) target = $region12
      $region11: #{tpu_custom_call.1} parent=5 // pred_region
        %s386 = ssub.s32 %s26, 1
        // Predicated region
        $region13: #{tpu_custom_call.1} parent=11 // pred_check
          %p387 = pneg %p73
        $region14: #{tpu_custom_call.1} parent=11 // pred_check_branch
          %389 = sbr.rel (%p387) target = $region16
        $region15: #{tpu_custom_call.1} parent=11 // pred_region
          _
        $region16: #{tpu_custom_call.1} parent=11 // pred_fallthru
          _
        // Predicated region
        $region17: #{tpu_custom_call.1} parent=11 // pred_check
          %p390 = pneg %p94
        $region18: #{tpu_custom_call.1} parent=11 // pred_check_branch
          %392 = sbr.rel (%p390) target = $region20
        $region19: #{tpu_custom_call.1} parent=11 // pred_region
          _
        $region20: #{tpu_custom_call.1} parent=11 // pred_fallthru
          _
        // Predicated region
        $region21: #{tpu_custom_call.1} parent=11 // pred_check
          %p393 = pneg %p115
        $region22: #{tpu_custom_call.1} parent=11 // pred_check_branch
          %395 = sbr.rel (%p393) target = $region24
        $region23: #{tpu_custom_call.1} parent=11 // pred_region
          _
        $region24: #{tpu_custom_call.1} parent=11 // pred_fallthru
          _
        // Predicated region
        $region25: #{tpu_custom_call.1} parent=11 // pred_check
          %p396 = pneg %p136
        $region26: #{tpu_custom_call.1} parent=11 // pred_check_branch
          %398 = sbr.rel (%p396) target = $region28
        $region27: #{tpu_custom_call.1} parent=11 // pred_region
          _
        $region28: #{tpu_custom_call.1} parent=11 // pred_fallthru
          _
        // Predicated region
        $region29: #{tpu_custom_call.1} parent=11 // pred_check
          %p399 = pneg %p157
        $region30: #{tpu_custom_call.1} parent=11 // pred_check_branch
          %401 = sbr.rel (%p399) target = $region32
        $region31: #{tpu_custom_call.1} parent=11 // pred_region
          _
        $region32: #{tpu_custom_call.1} parent=11 // pred_fallthru
          _
        // Predicated region
        $region33: #{tpu_custom_call.1} parent=11 // pred_check
          %p402 = pneg %p178
        $region34: #{tpu_custom_call.1} parent=11 // pred_check_branch
          %404 = sbr.rel (%p402) target = $region36
        $region35: #{tpu_custom_call.1} parent=11 // pred_region
          _
        $region36: #{tpu_custom_call.1} parent=11 // pred_fallthru
          _
        // Predicated region
        $region37: #{tpu_custom_call.1} parent=11 // pred_check
          %p405 = pneg %p199
        $region38: #{tpu_custom_call.1} parent=11 // pred_check_branch
          %407 = sbr.rel (%p405) target = $region40
        $region39: #{tpu_custom_call.1} parent=11 // pred_region
          _
        $region40: #{tpu_custom_call.1} parent=11 // pred_fallthru
          _
        // Predicated region
        $region41: #{tpu_custom_call.1} parent=11 // pred_check
          %p408 = pneg %p220
        $region42: #{tpu_custom_call.1} parent=11 // pred_check_branch
          %410 = sbr.rel (%p408) target = $region44
        $region43: #{tpu_custom_call.1} parent=11 // pred_region
          _
        $region44: #{tpu_custom_call.1} parent=11 // pred_fallthru
          _
        // Predicated region
        $region45: #{tpu_custom_call.1} parent=11 // pred_check
          %p411 = pneg %p241
        $region46: #{tpu_custom_call.1} parent=11 // pred_check_branch
          %413 = sbr.rel (%p411) target = $region48
        $region47: #{tpu_custom_call.1} parent=11 // pred_region
          _
        $region48: #{tpu_custom_call.1} parent=11 // pred_fallthru
          _
        // Predicated region
        $region49: #{tpu_custom_call.1} parent=11 // pred_check
          %p414 = pneg %p262
        $region50: #{tpu_custom_call.1} parent=11 // pred_check_branch
          %416 = sbr.rel (%p414) target = $region52
        $region51: #{tpu_custom_call.1} parent=11 // pred_region
          _
        $region52: #{tpu_custom_call.1} parent=11 // pred_fallthru
          _
        // Predicated region
        $region53: #{tpu_custom_call.1} parent=11 // pred_check
          %p417 = pneg %p283
        $region54: #{tpu_custom_call.1} parent=11 // pred_check_branch
          %419 = sbr.rel (%p417) target = $region56
        $region55: #{tpu_custom_call.1} parent=11 // pred_region
          _
        $region56: #{tpu_custom_call.1} parent=11 // pred_fallthru
          _
        // Predicated region
        $region57: #{tpu_custom_call.1} parent=11 // pred_check
          %p420 = pneg %p304
        $region58: #{tpu_custom_call.1} parent=11 // pred_check_branch
          %422 = sbr.rel (%p420) target = $region60
        $region59: #{tpu_custom_call.1} parent=11 // pred_region
          _
        $region60: #{tpu_custom_call.1} parent=11 // pred_fallthru
          _
        // Predicated region
        $region61: #{tpu_custom_call.1} parent=11 // pred_check
          %p423 = pneg %p325
        $region62: #{tpu_custom_call.1} parent=11 // pred_check_branch
          %425 = sbr.rel (%p423) target = $region64
        $region63: #{tpu_custom_call.1} parent=11 // pred_region
          _
        $region64: #{tpu_custom_call.1} parent=11 // pred_fallthru
          _
        // Predicated region
        $region65: #{tpu_custom_call.1} parent=11 // pred_check
          %p426 = pneg %p346
        $region66: #{tpu_custom_call.1} parent=11 // pred_check_branch
          %428 = sbr.rel (%p426) target = $region68
        $region67: #{tpu_custom_call.1} parent=11 // pred_region
          _
        $region68: #{tpu_custom_call.1} parent=11 // pred_fallthru
          _
      $region12: #{tpu_custom_call.1} parent=5 // pred_fallthru
        _
      %p429 = scmp.lt.s32.totalorder %s26, 2
      // Predicated region
      $region69: #{tpu_custom_call.1} parent=5 // pred_check
        %p430 = pneg %p429
      $region70: #{tpu_custom_call.1} parent=5 // pred_check_branch
        %432 = sbr.rel (%p430) target = $region72
      $region71: #{tpu_custom_call.1} parent=5 // pred_region
        // Predicated region
        $region73: #{tpu_custom_call.1} parent=71 // pred_check
          %p433 = pneg %p46
        $region74: #{tpu_custom_call.1} parent=71 // pred_check_branch
          %435 = sbr.rel (%p433) target = $region76
        $region75: #{tpu_custom_call.1} parent=71 // pred_region
          %s436 = smul.u32 16, %s26
          %p437 = scmp.lt.s32.totalorder %s436, 31
          %s438 = scalar_select %p437, %s436, 31
          %s439 = smul.addr %s438, 8
          %s440 = scalar_lea.vmem %s0, %s439
          %s441 = smul.u32 16, %s26
        $region76: #{tpu_custom_call.1} parent=71 // pred_fallthru
          _
      $region72: #{tpu_custom_call.1} parent=5 // pred_fallthru
        _
      %p442 = scmp.le.s32.totalorder 1, %s26
      %p443 = scmp.lt.s32.totalorder %s26, 3
      %p444 = pnand %p442, %p443
      %p445 = pneg %p444
      // Predicated region
      $region77: #{tpu_custom_call.1} parent=5 // pred_check
        _
      $region78: #{tpu_custom_call.1} parent=5 // pred_check_branch
        %447 = sbr.rel (%p444) target = $region80
      $region79: #{tpu_custom_call.1} parent=5 // pred_region
        %s448 = ssub.s32 %s26, 1
        %s449 = smul.u32 16, %s31
        %p450 = scmp.lt.s32.totalorder %s449, 31
        %s451 = scalar_select %p450, %s449, 31
        %s452 = smul.addr %s451, 8
        %s453 = scalar_lea.vmem %s0, %s452
        %p454 = pneg %p52
        %p455 = pneg %p49
        %p456 = pneg %p73
        %p457 = pneg %p70
        %p458 = pneg %p94
        %p459 = pneg %p91
        %p460 = pneg %p115
        %p461 = pneg %p112
        %p462 = pneg %p136
        %p463 = pneg %p133
        %p464 = pneg %p157
        %p465 = pneg %p154
        %p466 = pneg %p178
        %p467 = pneg %p175
        %p468 = pneg %p199
        %p469 = pneg %p196
        %p470 = pneg %p220
        %p471 = pneg %p217
        %p472 = pneg %p241
        %p473 = pneg %p238
        %p474 = pneg %p262
        %p475 = pneg %p259
        %p476 = pneg %p283
        %p477 = pneg %p280
        %p478 = pneg %p304
        %p479 = pneg %p301
        %p480 = pneg %p325
        %p481 = pneg %p322
        %p482 = pneg %p346
        %p483 = pneg %p343
        %p484 = pneg %p372
        %p485 = pneg %p369
        %s486 = sand.u32 %s359, 1
        %s487 = scalar_lea.sflag [#allocation4], %s486
        %s488 = sand.u32 %s359, 1
        %s489 = scalar_lea.vmem [#allocation3], %s488
        %s490 = smul.u32 16, %s31
        %p491 = scmp.lt.s32.totalorder %s490, 31
        %s492 = scalar_select %p491, %s490, 31
        %s493 = smul.addr %s492, 8
        %s494 = scalar_lea.vmem %s0, %s493
        %s495 = smul.u32 16, %s31
        %v496 = vld [vmem:[%s494] sm:$0xff]
        %v497 = vld [vmem:[%s494 + $0x8] sm:$0xff]
        %v498 = vld [vmem:[%s494 + $0x10] sm:$0xff]
        %v499 = vld [vmem:[%s494 + $0x18] sm:$0xff]
        %v500 = vld [vmem:[%s494 + $0x20] sm:$0xff]
        %v501 = vld [vmem:[%s494 + $0x28] sm:$0xff]
        %v502 = vld [vmem:[%s494 + $0x30] sm:$0xff]
        %v503 = vld [vmem:[%s494 + $0x38] sm:$0xff]
        %v504 = vld [vmem:[%s494 + $0x40] sm:$0xff]
        %v505 = vld [vmem:[%s494 + $0x48] sm:$0xff]
        %v506 = vld [vmem:[%s494 + $0x50] sm:$0xff]
        %v507 = vld [vmem:[%s494 + $0x58] sm:$0xff]
        %v508 = vld [vmem:[%s494 + $0x60] sm:$0xff]
        %v509 = vld [vmem:[%s494 + $0x68] sm:$0xff]
        %v510 = vld [vmem:[%s494 + $0x70] sm:$0xff]
        %v511 = vld [vmem:[%s494 + $0x78] sm:$0xff]
        %v512 = vld [vmem:[%s1] sm:$0xff]
        %v513 = vld [vmem:[%s1 + $0x8] sm:$0xff]
        %v514 = vld [vmem:[%s2] sm:$0x1]
        %v516 = vperm.slane %v514, 0
        %vm518 = vcmask 130048
        %v520 = vsel %vm518, %v496, 0
        %v523 = vsel %vm518, %v497, 0
        %v526 = vsel %vm518, %v498, 0
        %v529 = vsel %vm518, %v499, 0
        %v532 = vsel %vm518, %v500, 0
        %v535 = vsel %vm518, %v501, 0
        %v538 = vsel %vm518, %v502, 0
        %v541 = vsel %vm518, %v503, 0
        %v544 = vsel %vm518, %v504, 0
        %v547 = vsel %vm518, %v505, 0
        %v550 = vsel %vm518, %v506, 0
        %v553 = vsel %vm518, %v507, 0
        %v556 = vsel %vm518, %v508, 0
        %v559 = vsel %vm518, %v509, 0
        %v562 = vsel %vm518, %v510, 0
        %v565 = vsel %vm518, %v511, 0
        %567 = vmatpush.msra.mxu0 0.0
        %568 = vmatpush.msra.mxu0 0.0
        %569 = vmatpush.msra.mxu0 0.0
        %570 = vmatpush.msra.mxu0 0.0
        %571 = vmatpush.msra.mxu0 0.0
        %572 = vmatpush.msra.mxu0 0.0
        %573 = vmatpush.msra.mxu0 0.0
        %574 = vmatpush.msra.mxu0 0.0
        %575 = vmatpush.msra.mxu0 0.0
        %576 = vmatpush.msra.mxu0 0.0
        %577 = vmatpush.msra.mxu0 0.0
        %578 = vmatpush.msra.mxu0 0.0
        %579 = vmatpush.msra.mxu0 0.0
        %580 = vmatpush.msra.mxu0 0.0
        %581 = vmatpush.msra.mxu0 %v513
        %582 = vmatpush.msra.mxu0 %v512
        %583 = vmatmul.f32.gmra.mxu0 %v520
        %v584 = vpop.f32.mrf.mxu0
        %v585 = vadd.f32 %v516, %v584
        %586 = vmatmul.f32.gmra.mxu0 %v523
        %v587 = vpop.f32.mrf.mxu0
        %v588 = vadd.f32 %v516, %v587
        %589 = vmatmul.f32.gmra.mxu0 %v526
        %v590 = vpop.f32.mrf.mxu0
        %v591 = vadd.f32 %v516, %v590
        %592 = vmatmul.f32.gmra.mxu0 %v529
        %v593 = vpop.f32.mrf.mxu0
        %v594 = vadd.f32 %v516, %v593
        %595 = vmatmul.f32.gmra.mxu0 %v532
        %v596 = vpop.f32.mrf.mxu0
        %v597 = vadd.f32 %v516, %v596
        %598 = vmatmul.f32.gmra.mxu0 %v535
        %v599 = vpop.f32.mrf.mxu0
        %v600 = vadd.f32 %v516, %v599
        %601 = vmatmul.f32.gmra.mxu0 %v538
        %v602 = vpop.f32.mrf.mxu0
        %v603 = vadd.f32 %v516, %v602
        %604 = vmatmul.f32.gmra.mxu0 %v541
        %v605 = vpop.f32.mrf.mxu0
        %v606 = vadd.f32 %v516, %v605
        %607 = vmatmul.f32.gmra.mxu0 %v544
        %v608 = vpop.f32.mrf.mxu0
        %v609 = vadd.f32 %v516, %v608
        %610 = vmatmul.f32.gmra.mxu0 %v547
        %v611 = vpop.f32.mrf.mxu0
        %v612 = vadd.f32 %v516, %v611
        %613 = vmatmul.f32.gmra.mxu0 %v550
        %v614 = vpop.f32.mrf.mxu0
        %v615 = vadd.f32 %v516, %v614
        %616 = vmatmul.f32.gmra.mxu0 %v553
        %v617 = vpop.f32.mrf.mxu0
        %v618 = vadd.f32 %v516, %v617
        %619 = vmatmul.f32.gmra.mxu0 %v556
        %v620 = vpop.f32.mrf.mxu0
        %v621 = vadd.f32 %v516, %v620
        %622 = vmatmul.f32.gmra.mxu0 %v559
        %v623 = vpop.f32.mrf.mxu0
        %v624 = vadd.f32 %v516, %v623
        %625 = vmatmul.f32.gmra.mxu0 %v562
        %v626 = vpop.f32.mrf.mxu0
        %v627 = vadd.f32 %v516, %v626
        %628 = vmatmul.f32.gmra.mxu0 %v565
        %v629 = vpop.f32.mrf.mxu0
        %v630 = vadd.f32 %v516, %v629
        %631 = vdwg.mxu0
        %v632 = vmax.f32 %v585, 0.0
        %v633 = vmax.f32 %v588, 0.0
        %v634 = vmax.f32 %v591, 0.0
        %v635 = vmax.f32 %v594, 0.0
        %v636 = vmax.f32 %v597, 0.0
        %v637 = vmax.f32 %v600, 0.0
        %v638 = vmax.f32 %v603, 0.0
        %v639 = vmax.f32 %v606, 0.0
        %v640 = vmax.f32 %v609, 0.0
        %v641 = vmax.f32 %v612, 0.0
        %v642 = vmax.f32 %v615, 0.0
        %v643 = vmax.f32 %v618, 0.0
        %v644 = vmax.f32 %v621, 0.0
        %v645 = vmax.f32 %v624, 0.0
        %v646 = vmax.f32 %v627, 0.0
        %v647 = vmax.f32 %v630, 0.0
        %v648 = vld [vmem:[%s3] sm:$0xff]
        %v649 = vld [vmem:[%s3 + $0x8] sm:$0xff]
        %v650 = vld [vmem:[%s3 + $0x10] sm:$0xff]
        %v651 = vld [vmem:[%s3 + $0x18] sm:$0xff]
        %v652 = vld [vmem:[%s4] sm:$0x1]
        %v654 = vperm.slane %v652, 0
        %vm656 = vcmask 261120
        %v658 = vsel %vm656, %v632, 0
        %v661 = vsel %vm656, %v633, 0
        %v664 = vsel %vm656, %v634, 0
        %v667 = vsel %vm656, %v635, 0
        %v670 = vsel %vm656, %v636, 0
        %v673 = vsel %vm656, %v637, 0
        %v676 = vsel %vm656, %v638, 0
        %v679 = vsel %vm656, %v639, 0
        %v682 = vsel %vm656, %v640, 0
        %v685 = vsel %vm656, %v641, 0
        %v688 = vsel %vm656, %v642, 0
        %v691 = vsel %vm656, %v643, 0
        %v694 = vsel %vm656, %v644, 0
        %v697 = vsel %vm656, %v645, 0
        %v700 = vsel %vm656, %v646, 0
        %v703 = vsel %vm656, %v647, 0
        %705 = vmatpush.msra.mxu0 0.0
        %706 = vmatpush.msra.mxu0 0.0
        %707 = vmatpush.msra.mxu0 0.0
        %708 = vmatpush.msra.mxu0 0.0
        %709 = vmatpush.msra.mxu0 0.0
        %710 = vmatpush.msra.mxu0 0.0
        %711 = vmatpush.msra.mxu0 0.0
        %712 = vmatpush.msra.mxu0 0.0
        %713 = vmatpush.msra.mxu0 0.0
        %714 = vmatpush.msra.mxu0 0.0
        %715 = vmatpush.msra.mxu0 0.0
        %716 = vmatpush.msra.mxu0 0.0
        %717 = vmatpush.msra.mxu0 %v651
        %718 = vmatpush.msra.mxu0 %v650
        %719 = vmatpush.msra.mxu0 %v649
        %720 = vmatpush.msra.mxu0 %v648
        %721 = vmatmul.f32.gmra.mxu0 %v658
        %v722 = vpop.f32.mrf.mxu0
        %v723 = vadd.f32 %v654, %v722
        %724 = vmatmul.f32.gmra.mxu0 %v661
        %v725 = vpop.f32.mrf.mxu0
        %v726 = vadd.f32 %v654, %v725
        %727 = vmatmul.f32.gmra.mxu0 %v664
        %v728 = vpop.f32.mrf.mxu0
        %v729 = vadd.f32 %v654, %v728
        %730 = vmatmul.f32.gmra.mxu0 %v667
        %v731 = vpop.f32.mrf.mxu0
        %v732 = vadd.f32 %v654, %v731
        %733 = vmatmul.f32.gmra.mxu0 %v670
        %v734 = vpop.f32.mrf.mxu0
        %v735 = vadd.f32 %v654, %v734
        %736 = vmatmul.f32.gmra.mxu0 %v673
        %v737 = vpop.f32.mrf.mxu0
        %v738 = vadd.f32 %v654, %v737
        %739 = vmatmul.f32.gmra.mxu0 %v676
        %v740 = vpop.f32.mrf.mxu0
        %v741 = vadd.f32 %v654, %v740
        %742 = vmatmul.f32.gmra.mxu0 %v679
        %v743 = vpop.f32.mrf.mxu0
        %v744 = vadd.f32 %v654, %v743
        %745 = vmatmul.f32.gmra.mxu0 %v682
        %v746 = vpop.f32.mrf.mxu0
        %v747 = vadd.f32 %v654, %v746
        %748 = vmatmul.f32.gmra.mxu0 %v685
        %v749 = vpop.f32.mrf.mxu0
        %v750 = vadd.f32 %v654, %v749
        %751 = vmatmul.f32.gmra.mxu0 %v688
        %v752 = vpop.f32.mrf.mxu0
        %v753 = vadd.f32 %v654, %v752
        %754 = vmatmul.f32.gmra.mxu0 %v691
        %v755 = vpop.f32.mrf.mxu0
        %v756 = vadd.f32 %v654, %v755
        %757 = vmatmul.f32.gmra.mxu0 %v694
        %v758 = vpop.f32.mrf.mxu0
        %v759 = vadd.f32 %v654, %v758
        %760 = vmatmul.f32.gmra.mxu0 %v697
        %v761 = vpop.f32.mrf.mxu0
        %v762 = vadd.f32 %v654, %v761
        %763 = vmatmul.f32.gmra.mxu0 %v700
        %v764 = vpop.f32.mrf.mxu0
        %v765 = vadd.f32 %v654, %v764
        %766 = vmatmul.f32.gmra.mxu0 %v703
        %v767 = vpop.f32.mrf.mxu0
        %v768 = vadd.f32 %v654, %v767
        %769 = vdwg.mxu0
        %v770 = vmax.f32 %v723, 0.0
        %v771 = vmax.f32 %v726, 0.0
        %v772 = vmax.f32 %v729, 0.0
        %v773 = vmax.f32 %v732, 0.0
        %v774 = vmax.f32 %v735, 0.0
        %v775 = vmax.f32 %v738, 0.0
        %v776 = vmax.f32 %v741, 0.0
        %v777 = vmax.f32 %v744, 0.0
        %v778 = vmax.f32 %v747, 0.0
        %v779 = vmax.f32 %v750, 0.0
        %v780 = vmax.f32 %v753, 0.0
        %v781 = vmax.f32 %v756, 0.0
        %v782 = vmax.f32 %v759, 0.0
        %v783 = vmax.f32 %v762, 0.0
        %v784 = vmax.f32 %v765, 0.0
        %v785 = vmax.f32 %v768, 0.0
        %v786 = vld [vmem:[%s5] sm:$0xff]
        %v787 = vld [vmem:[%s5 + $0x8] sm:$0xff]
        %v788 = vld [vmem:[%s5 + $0x10] sm:$0xff]
        %v789 = vld [vmem:[%s5 + $0x18] sm:$0xff]
        %v790 = vld [vmem:[%s6] sm:$0x1]
        %v792 = vperm.slane %v790, 0
        %v795 = vsel %vm656, %v770, 0
        %v798 = vsel %vm656, %v771, 0
        %v801 = vsel %vm656, %v772, 0
        %v804 = vsel %vm656, %v773, 0
        %v807 = vsel %vm656, %v774, 0
        %v810 = vsel %vm656, %v775, 0
        %v813 = vsel %vm656, %v776, 0
        %v816 = vsel %vm656, %v777, 0
        %v819 = vsel %vm656, %v778, 0
        %v822 = vsel %vm656, %v779, 0
        %v825 = vsel %vm656, %v780, 0
        %v828 = vsel %vm656, %v781, 0
        %v831 = vsel %vm656, %v782, 0
        %v834 = vsel %vm656, %v783, 0
        %v837 = vsel %vm656, %v784, 0
        %v840 = vsel %vm656, %v785, 0
        %842 = vmatpush.msra.mxu0 0.0
        %843 = vmatpush.msra.mxu0 0.0
        %844 = vmatpush.msra.mxu0 0.0
        %845 = vmatpush.msra.mxu0 0.0
        %846 = vmatpush.msra.mxu0 0.0
        %847 = vmatpush.msra.mxu0 0.0
        %848 = vmatpush.msra.mxu0 0.0
        %849 = vmatpush.msra.mxu0 0.0
        %850 = vmatpush.msra.mxu0 0.0
        %851 = vmatpush.msra.mxu0 0.0
        %852 = vmatpush.msra.mxu0 0.0
        %853 = vmatpush.msra.mxu0 0.0
        %854 = vmatpush.msra.mxu0 %v789
        %855 = vmatpush.msra.mxu0 %v788
        %856 = vmatpush.msra.mxu0 %v787
        %857 = vmatpush.msra.mxu0 %v786
        %858 = vmatmul.f32.gmra.mxu0 %v795
        %v859 = vpop.f32.mrf.mxu0
        %v860 = vadd.f32 %v792, %v859
        %861 = vmatmul.f32.gmra.mxu0 %v798
        %v862 = vpop.f32.mrf.mxu0
        %v863 = vadd.f32 %v792, %v862
        %864 = vmatmul.f32.gmra.mxu0 %v801
        %v865 = vpop.f32.mrf.mxu0
        %v866 = vadd.f32 %v792, %v865
        %867 = vmatmul.f32.gmra.mxu0 %v804
        %v868 = vpop.f32.mrf.mxu0
        %v869 = vadd.f32 %v792, %v868
        %870 = vmatmul.f32.gmra.mxu0 %v807
        %v871 = vpop.f32.mrf.mxu0
        %v872 = vadd.f32 %v792, %v871
        %873 = vmatmul.f32.gmra.mxu0 %v810
        %v874 = vpop.f32.mrf.mxu0
        %v875 = vadd.f32 %v792, %v874
        %876 = vmatmul.f32.gmra.mxu0 %v813
        %v877 = vpop.f32.mrf.mxu0
        %v878 = vadd.f32 %v792, %v877
        %879 = vmatmul.f32.gmra.mxu0 %v816
        %v880 = vpop.f32.mrf.mxu0
        %v881 = vadd.f32 %v792, %v880
        %882 = vmatmul.f32.gmra.mxu0 %v819
        %v883 = vpop.f32.mrf.mxu0
        %v884 = vadd.f32 %v792, %v883
        %885 = vmatmul.f32.gmra.mxu0 %v822
        %v886 = vpop.f32.mrf.mxu0
        %v887 = vadd.f32 %v792, %v886
        %888 = vmatmul.f32.gmra.mxu0 %v825
        %v889 = vpop.f32.mrf.mxu0
        %v890 = vadd.f32 %v792, %v889
        %891 = vmatmul.f32.gmra.mxu0 %v828
        %v892 = vpop.f32.mrf.mxu0
        %v893 = vadd.f32 %v792, %v892
        %894 = vmatmul.f32.gmra.mxu0 %v831
        %v895 = vpop.f32.mrf.mxu0
        %v896 = vadd.f32 %v792, %v895
        %897 = vmatmul.f32.gmra.mxu0 %v834
        %v898 = vpop.f32.mrf.mxu0
        %v899 = vadd.f32 %v792, %v898
        %900 = vmatmul.f32.gmra.mxu0 %v837
        %v901 = vpop.f32.mrf.mxu0
        %v902 = vadd.f32 %v792, %v901
        %903 = vmatmul.f32.gmra.mxu0 %v840
        %v904 = vpop.f32.mrf.mxu0
        %v905 = vadd.f32 %v792, %v904
        %906 = vdwg.mxu0
        %v907 = vmax.f32 %v860, 0.0
        %v908 = vmax.f32 %v863, 0.0
        %v909 = vmax.f32 %v866, 0.0
        %v910 = vmax.f32 %v869, 0.0
        %v911 = vmax.f32 %v872, 0.0
        %v912 = vmax.f32 %v875, 0.0
        %v913 = vmax.f32 %v878, 0.0
        %v914 = vmax.f32 %v881, 0.0
        %v915 = vmax.f32 %v884, 0.0
        %v916 = vmax.f32 %v887, 0.0
        %v917 = vmax.f32 %v890, 0.0
        %v918 = vmax.f32 %v893, 0.0
        %v919 = vmax.f32 %v896, 0.0
        %v920 = vmax.f32 %v899, 0.0
        %v921 = vmax.f32 %v902, 0.0
        %v922 = vmax.f32 %v905, 0.0
        %v923 = vld [vmem:[%s7] sm:$0xff]
        %v924 = vld [vmem:[%s7 + $0x8] sm:$0xff]
        %v925 = vld [vmem:[%s7 + $0x10] sm:$0xff]
        %v926 = vld [vmem:[%s7 + $0x18] sm:$0xff]
        %v927 = vld [vmem:[%s8] sm:$0x1]
        %v929 = vperm.slane %v927, 0
        %v932 = vsel %vm656, %v907, 0
        %v935 = vsel %vm656, %v908, 0
        %v938 = vsel %vm656, %v909, 0
        %v941 = vsel %vm656, %v910, 0
        %v944 = vsel %vm656, %v911, 0
        %v947 = vsel %vm656, %v912, 0
        %v950 = vsel %vm656, %v913, 0
        %v953 = vsel %vm656, %v914, 0
        %v956 = vsel %vm656, %v915, 0
        %v959 = vsel %vm656, %v916, 0
        %v962 = vsel %vm656, %v917, 0
        %v965 = vsel %vm656, %v918, 0
        %v968 = vsel %vm656, %v919, 0
        %v971 = vsel %vm656, %v920, 0
        %v974 = vsel %vm656, %v921, 0
        %v977 = vsel %vm656, %v922, 0
        %979 = vmatpush.msra.mxu0 0.0
        %980 = vmatpush.msra.mxu0 0.0
        %981 = vmatpush.msra.mxu0 0.0
        %982 = vmatpush.msra.mxu0 0.0
        %983 = vmatpush.msra.mxu0 0.0
        %984 = vmatpush.msra.mxu0 0.0
        %985 = vmatpush.msra.mxu0 0.0
        %986 = vmatpush.msra.mxu0 0.0
        %987 = vmatpush.msra.mxu0 0.0
        %988 = vmatpush.msra.mxu0 0.0
        %989 = vmatpush.msra.mxu0 0.0
        %990 = vmatpush.msra.mxu0 0.0
        %991 = vmatpush.msra.mxu0 %v926
        %992 = vmatpush.msra.mxu0 %v925
        %993 = vmatpush.msra.mxu0 %v924
        %994 = vmatpush.msra.mxu0 %v923
        %995 = vmatmul.f32.gmra.mxu0 %v932
        %v996 = vpop.f32.mrf.mxu0
        %v997 = vadd.f32 %v929, %v996
        %998 = vmatmul.f32.gmra.mxu0 %v935
        %v999 = vpop.f32.mrf.mxu0
        %v1000 = vadd.f32 %v929, %v999
        %1001 = vmatmul.f32.gmra.mxu0 %v938
        %v1002 = vpop.f32.mrf.mxu0
        %v1003 = vadd.f32 %v929, %v1002
        %1004 = vmatmul.f32.gmra.mxu0 %v941
        %v1005 = vpop.f32.mrf.mxu0
        %v1006 = vadd.f32 %v929, %v1005
        %1007 = vmatmul.f32.gmra.mxu0 %v944
        %v1008 = vpop.f32.mrf.mxu0
        %v1009 = vadd.f32 %v929, %v1008
        %1010 = vmatmul.f32.gmra.mxu0 %v947
        %v1011 = vpop.f32.mrf.mxu0
        %v1012 = vadd.f32 %v929, %v1011
        %1013 = vmatmul.f32.gmra.mxu0 %v950
        %v1014 = vpop.f32.mrf.mxu0
        %v1015 = vadd.f32 %v929, %v1014
        %1016 = vmatmul.f32.gmra.mxu0 %v953
        %v1017 = vpop.f32.mrf.mxu0
        %v1018 = vadd.f32 %v929, %v1017
        %1019 = vmatmul.f32.gmra.mxu0 %v956
        %v1020 = vpop.f32.mrf.mxu0
        %v1021 = vadd.f32 %v929, %v1020
        %1022 = vmatmul.f32.gmra.mxu0 %v959
        %v1023 = vpop.f32.mrf.mxu0
        %v1024 = vadd.f32 %v929, %v1023
        %1025 = vmatmul.f32.gmra.mxu0 %v962
        %v1026 = vpop.f32.mrf.mxu0
        %v1027 = vadd.f32 %v929, %v1026
        %1028 = vmatmul.f32.gmra.mxu0 %v965
        %v1029 = vpop.f32.mrf.mxu0
        %v1030 = vadd.f32 %v929, %v1029
        %1031 = vmatmul.f32.gmra.mxu0 %v968
        %v1032 = vpop.f32.mrf.mxu0
        %v1033 = vadd.f32 %v929, %v1032
        %1034 = vmatmul.f32.gmra.mxu0 %v971
        %v1035 = vpop.f32.mrf.mxu0
        %v1036 = vadd.f32 %v929, %v1035
        %1037 = vmatmul.f32.gmra.mxu0 %v974
        %v1038 = vpop.f32.mrf.mxu0
        %v1039 = vadd.f32 %v929, %v1038
        %1040 = vmatmul.f32.gmra.mxu0 %v977
        %v1041 = vpop.f32.mrf.mxu0
        %v1042 = vadd.f32 %v929, %v1041
        %1043 = vdwg.mxu0
        %v1044 = vmax.f32 %v997, 0.0
        %v1045 = vmax.f32 %v1000, 0.0
        %v1046 = vmax.f32 %v1003, 0.0
        %v1047 = vmax.f32 %v1006, 0.0
        %v1048 = vmax.f32 %v1009, 0.0
        %v1049 = vmax.f32 %v1012, 0.0
        %v1050 = vmax.f32 %v1015, 0.0
        %v1051 = vmax.f32 %v1018, 0.0
        %v1052 = vmax.f32 %v1021, 0.0
        %v1053 = vmax.f32 %v1024, 0.0
        %v1054 = vmax.f32 %v1027, 0.0
        %v1055 = vmax.f32 %v1030, 0.0
        %v1056 = vmax.f32 %v1033, 0.0
        %v1057 = vmax.f32 %v1036, 0.0
        %v1058 = vmax.f32 %v1039, 0.0
        %v1059 = vmax.f32 %v1042, 0.0
        %v1060 = vld [vmem:[%s9] sm:$0xff]
        %v1061 = vld [vmem:[%s9 + $0x8] sm:$0xff]
        %v1062 = vld [vmem:[%s9 + $0x10] sm:$0xff]
        %v1063 = vld [vmem:[%s9 + $0x18] sm:$0xff]
        %v1064 = vld [vmem:[%s9 + $0x20] sm:$0xff]
        %v1065 = vld [vmem:[%s9 + $0x28] sm:$0xff]
        %v1066 = vld [vmem:[%s9 + $0x30] sm:$0xff]
        %v1067 = vld [vmem:[%s9 + $0x38] sm:$0xff]
        %v1068 = vld [vmem:[%s10] sm:$0x1]
        %v1070 = vperm.slane %v1068, 0
        %vm1072 = vcmask 523264
        %v1074 = vsel %vm1072, %v1044, 0
        %v1077 = vsel %vm1072, %v1045, 0
        %v1080 = vsel %vm1072, %v1046, 0
        %v1083 = vsel %vm1072, %v1047, 0
        %v1086 = vsel %vm1072, %v1048, 0
        %v1089 = vsel %vm1072, %v1049, 0
        %v1092 = vsel %vm1072, %v1050, 0
        %v1095 = vsel %vm1072, %v1051, 0
        %v1098 = vsel %vm1072, %v1052, 0
        %v1101 = vsel %vm1072, %v1053, 0
        %v1104 = vsel %vm1072, %v1054, 0
        %v1107 = vsel %vm1072, %v1055, 0
        %v1110 = vsel %vm1072, %v1056, 0
        %v1113 = vsel %vm1072, %v1057, 0
        %v1116 = vsel %vm1072, %v1058, 0
        %v1119 = vsel %vm1072, %v1059, 0
        %1121 = vmatpush.msra.mxu0 0.0
        %1122 = vmatpush.msra.mxu0 0.0
        %1123 = vmatpush.msra.mxu0 0.0
        %1124 = vmatpush.msra.mxu0 0.0
        %1125 = vmatpush.msra.mxu0 0.0
        %1126 = vmatpush.msra.mxu0 0.0
        %1127 = vmatpush.msra.mxu0 0.0
        %1128 = vmatpush.msra.mxu0 0.0
        %1129 = vmatpush.msra.mxu0 %v1067
        %1130 = vmatpush.msra.mxu0 %v1066
        %1131 = vmatpush.msra.mxu0 %v1065
        %1132 = vmatpush.msra.mxu0 %v1064
        %1133 = vmatpush.msra.mxu0 %v1063
        %1134 = vmatpush.msra.mxu0 %v1062
        %1135 = vmatpush.msra.mxu0 %v1061
        %1136 = vmatpush.msra.mxu0 %v1060
        %1137 = vmatmul.f32.gmra.mxu0 %v1074
        %v1138 = vpop.f32.mrf.mxu0
        %v1139 = vadd.f32 %v1070, %v1138
        %1140 = vmatmul.f32.gmra.mxu0 %v1077
        %v1141 = vpop.f32.mrf.mxu0
        %v1142 = vadd.f32 %v1070, %v1141
        %1143 = vmatmul.f32.gmra.mxu0 %v1080
        %v1144 = vpop.f32.mrf.mxu0
        %v1145 = vadd.f32 %v1070, %v1144
        %1146 = vmatmul.f32.gmra.mxu0 %v1083
        %v1147 = vpop.f32.mrf.mxu0
        %v1148 = vadd.f32 %v1070, %v1147
        %1149 = vmatmul.f32.gmra.mxu0 %v1086
        %v1150 = vpop.f32.mrf.mxu0
        %v1151 = vadd.f32 %v1070, %v1150
        %1152 = vmatmul.f32.gmra.mxu0 %v1089
        %v1153 = vpop.f32.mrf.mxu0
        %v1154 = vadd.f32 %v1070, %v1153
        %1155 = vmatmul.f32.gmra.mxu0 %v1092
        %v1156 = vpop.f32.mrf.mxu0
        %v1157 = vadd.f32 %v1070, %v1156
        %1158 = vmatmul.f32.gmra.mxu0 %v1095
        %v1159 = vpop.f32.mrf.mxu0
        %v1160 = vadd.f32 %v1070, %v1159
        %1161 = vmatmul.f32.gmra.mxu0 %v1098
        %v1162 = vpop.f32.mrf.mxu0
        %v1163 = vadd.f32 %v1070, %v1162
        %1164 = vmatmul.f32.gmra.mxu0 %v1101
        %v1165 = vpop.f32.mrf.mxu0
        %v1166 = vadd.f32 %v1070, %v1165
        %1167 = vmatmul.f32.gmra.mxu0 %v1104
        %v1168 = vpop.f32.mrf.mxu0
        %v1169 = vadd.f32 %v1070, %v1168
        %1170 = vmatmul.f32.gmra.mxu0 %v1107
        %v1171 = vpop.f32.mrf.mxu0
        %v1172 = vadd.f32 %v1070, %v1171
        %1173 = vmatmul.f32.gmra.mxu0 %v1110
        %v1174 = vpop.f32.mrf.mxu0
        %v1175 = vadd.f32 %v1070, %v1174
        %1176 = vmatmul.f32.gmra.mxu0 %v1113
        %v1177 = vpop.f32.mrf.mxu0
        %v1178 = vadd.f32 %v1070, %v1177
        %1179 = vmatmul.f32.gmra.mxu0 %v1116
        %v1180 = vpop.f32.mrf.mxu0
        %v1181 = vadd.f32 %v1070, %v1180
        %1182 = vmatmul.f32.gmra.mxu0 %v1119
        %v1183 = vpop.f32.mrf.mxu0
        %v1184 = vadd.f32 %v1070, %v1183
        %1185 = vdwg.mxu0
        %v1186 = vmax.f32 %v1139, 0.0
        %v1187 = vmax.f32 %v1142, 0.0
        %v1188 = vmax.f32 %v1145, 0.0
        %v1189 = vmax.f32 %v1148, 0.0
        %v1190 = vmax.f32 %v1151, 0.0
        %v1191 = vmax.f32 %v1154, 0.0
        %v1192 = vmax.f32 %v1157, 0.0
        %v1193 = vmax.f32 %v1160, 0.0
        %v1194 = vmax.f32 %v1163, 0.0
        %v1195 = vmax.f32 %v1166, 0.0
        %v1196 = vmax.f32 %v1169, 0.0
        %v1197 = vmax.f32 %v1172, 0.0
        %v1198 = vmax.f32 %v1175, 0.0
        %v1199 = vmax.f32 %v1178, 0.0
        %v1200 = vmax.f32 %v1181, 0.0
        %v1201 = vmax.f32 %v1184, 0.0
        %v1202 = vld [vmem:[%s11] sm:$0xff]
        %v1203 = vld [vmem:[%s11 + $0x8] sm:$0xff]
        %v1204 = vld [vmem:[%s11 + $0x10] sm:$0xff]
        %v1205 = vld [vmem:[%s11 + $0x18] sm:$0xff]
        %v1206 = vld [vmem:[%s11 + $0x20] sm:$0xff]
        %v1207 = vld [vmem:[%s11 + $0x28] sm:$0xff]
        %v1208 = vld [vmem:[%s11 + $0x30] sm:$0xff]
        %v1209 = vld [vmem:[%s11 + $0x38] sm:$0xff]
        %v1210 = vld [vmem:[%s12] sm:$0x1]
        %v1212 = vperm.slane %v1210, 0
        %v1215 = vsel %vm1072, %v1186, 0
        %v1218 = vsel %vm1072, %v1187, 0
        %v1221 = vsel %vm1072, %v1188, 0
        %v1224 = vsel %vm1072, %v1189, 0
        %v1227 = vsel %vm1072, %v1190, 0
        %v1230 = vsel %vm1072, %v1191, 0
        %v1233 = vsel %vm1072, %v1192, 0
        %v1236 = vsel %vm1072, %v1193, 0
        %v1239 = vsel %vm1072, %v1194, 0
        %v1242 = vsel %vm1072, %v1195, 0
        %v1245 = vsel %vm1072, %v1196, 0
        %v1248 = vsel %vm1072, %v1197, 0
        %v1251 = vsel %vm1072, %v1198, 0
        %v1254 = vsel %vm1072, %v1199, 0
        %v1257 = vsel %vm1072, %v1200, 0
        %v1260 = vsel %vm1072, %v1201, 0
        %1262 = vmatpush.msra.mxu0 0.0
        %1263 = vmatpush.msra.mxu0 0.0
        %1264 = vmatpush.msra.mxu0 0.0
        %1265 = vmatpush.msra.mxu0 0.0
        %1266 = vmatpush.msra.mxu0 0.0
        %1267 = vmatpush.msra.mxu0 0.0
        %1268 = vmatpush.msra.mxu0 0.0
        %1269 = vmatpush.msra.mxu0 0.0
        %1270 = vmatpush.msra.mxu0 %v1209
        %1271 = vmatpush.msra.mxu0 %v1208
        %1272 = vmatpush.msra.mxu0 %v1207
        %1273 = vmatpush.msra.mxu0 %v1206
        %1274 = vmatpush.msra.mxu0 %v1205
        %1275 = vmatpush.msra.mxu0 %v1204
        %1276 = vmatpush.msra.mxu0 %v1203
        %1277 = vmatpush.msra.mxu0 %v1202
        %1278 = vmatmul.f32.gmra.mxu0 %v1215
        %v1279 = vpop.f32.mrf.mxu0
        %v1280 = vadd.f32 %v1212, %v1279
        %1281 = vmatmul.f32.gmra.mxu0 %v1218
        %v1282 = vpop.f32.mrf.mxu0
        %v1283 = vadd.f32 %v1212, %v1282
        %1284 = vmatmul.f32.gmra.mxu0 %v1221
        %v1285 = vpop.f32.mrf.mxu0
        %v1286 = vadd.f32 %v1212, %v1285
        %1287 = vmatmul.f32.gmra.mxu0 %v1224
        %v1288 = vpop.f32.mrf.mxu0
        %v1289 = vadd.f32 %v1212, %v1288
        %1290 = vmatmul.f32.gmra.mxu0 %v1227
        %v1291 = vpop.f32.mrf.mxu0
        %v1292 = vadd.f32 %v1212, %v1291
        %1293 = vmatmul.f32.gmra.mxu0 %v1230
        %v1294 = vpop.f32.mrf.mxu0
        %v1295 = vadd.f32 %v1212, %v1294
        %1296 = vmatmul.f32.gmra.mxu0 %v1233
        %v1297 = vpop.f32.mrf.mxu0
        %v1298 = vadd.f32 %v1212, %v1297
        %1299 = vmatmul.f32.gmra.mxu0 %v1236
        %v1300 = vpop.f32.mrf.mxu0
        %v1301 = vadd.f32 %v1212, %v1300
        %1302 = vmatmul.f32.gmra.mxu0 %v1239
        %v1303 = vpop.f32.mrf.mxu0
        %v1304 = vadd.f32 %v1212, %v1303
        %1305 = vmatmul.f32.gmra.mxu0 %v1242
        %v1306 = vpop.f32.mrf.mxu0
        %v1307 = vadd.f32 %v1212, %v1306
        %1308 = vmatmul.f32.gmra.mxu0 %v1245
        %v1309 = vpop.f32.mrf.mxu0
        %v1310 = vadd.f32 %v1212, %v1309
        %1311 = vmatmul.f32.gmra.mxu0 %v1248
        %v1312 = vpop.f32.mrf.mxu0
        %v1313 = vadd.f32 %v1212, %v1312
        %1314 = vmatmul.f32.gmra.mxu0 %v1251
        %v1315 = vpop.f32.mrf.mxu0
        %v1316 = vadd.f32 %v1212, %v1315
        %1317 = vmatmul.f32.gmra.mxu0 %v1254
        %v1318 = vpop.f32.mrf.mxu0
        %v1319 = vadd.f32 %v1212, %v1318
        %1320 = vmatmul.f32.gmra.mxu0 %v1257
        %v1321 = vpop.f32.mrf.mxu0
        %v1322 = vadd.f32 %v1212, %v1321
        %1323 = vmatmul.f32.gmra.mxu0 %v1260
        %v1324 = vpop.f32.mrf.mxu0
        %v1325 = vadd.f32 %v1212, %v1324
        %1326 = vdwg.mxu0
        %v1327 = vmax.f32 %v1280, 0.0
        %v1328 = vmax.f32 %v1283, 0.0
        %v1329 = vmax.f32 %v1286, 0.0
        %v1330 = vmax.f32 %v1289, 0.0
        %v1331 = vmax.f32 %v1292, 0.0
        %v1332 = vmax.f32 %v1295, 0.0
        %v1333 = vmax.f32 %v1298, 0.0
        %v1334 = vmax.f32 %v1301, 0.0
        %v1335 = vmax.f32 %v1304, 0.0
        %v1336 = vmax.f32 %v1307, 0.0
        %v1337 = vmax.f32 %v1310, 0.0
        %v1338 = vmax.f32 %v1313, 0.0
        %v1339 = vmax.f32 %v1316, 0.0
        %v1340 = vmax.f32 %v1319, 0.0
        %v1341 = vmax.f32 %v1322, 0.0
        %v1342 = vmax.f32 %v1325, 0.0
        %v1343 = vld [vmem:[%s13] sm:$0x1]
        %v1344 = vld [vmem:[#allocation2] sm:$0x1]
        %1346 = vset.pattern.permute.xlu0 0
        %1347 = vperm.xlu0 %1346, %v1344
        %v1348 = vpop.permute.xlu0 %1347
        %v1350 = vperm.slane %v1348, 0
        %v1352 = vsel %vm656, %v1343, 0
        %v1355 = vsel %vm656, %v1327, 0
        %v1358 = vsel %vm656, %v1328, 0
        %v1361 = vsel %vm656, %v1329, 0
        %v1364 = vsel %vm656, %v1330, 0
        %v1367 = vsel %vm656, %v1331, 0
        %v1370 = vsel %vm656, %v1332, 0
        %v1373 = vsel %vm656, %v1333, 0
        %v1376 = vsel %vm656, %v1334, 0
        %v1379 = vsel %vm656, %v1335, 0
        %v1382 = vsel %vm656, %v1336, 0
        %v1385 = vsel %vm656, %v1337, 0
        %v1388 = vsel %vm656, %v1338, 0
        %v1391 = vsel %vm656, %v1339, 0
        %v1394 = vsel %vm656, %v1340, 0
        %v1397 = vsel %vm656, %v1341, 0
        %v1400 = vsel %vm656, %v1342, 0
        %1402 = vmatpush.xpose.msra.mxu0 %v1400
        %1403 = vmatpush.xpose.msra.mxu0 %v1397
        %1404 = vmatpush.xpose.msra.mxu0 %v1394
        %1405 = vmatpush.xpose.msra.mxu0 %v1391
        %1406 = vmatpush.xpose.msra.mxu0 %v1388
        %1407 = vmatpush.xpose.msra.mxu0 %v1385
        %1408 = vmatpush.xpose.msra.mxu0 %v1382
        %1409 = vmatpush.xpose.msra.mxu0 %v1379
        %1410 = vmatpush.xpose.msra.mxu0 %v1376
        %1411 = vmatpush.xpose.msra.mxu0 %v1373
        %1412 = vmatpush.xpose.msra.mxu0 %v1370
        %1413 = vmatpush.xpose.msra.mxu0 %v1367
        %1414 = vmatpush.xpose.msra.mxu0 %v1364
        %1415 = vmatpush.xpose.msra.mxu0 %v1361
        %1416 = vmatpush.xpose.msra.mxu0 %v1358
        %1417 = vmatpush.xpose.msra.mxu0 %v1355
        %1418 = vmatmul.f32.gmra.mxu0 %v1352
        %v1419 = vpop.f32.mrf.mxu0
        %v1420 = vadd.f32 %v1350, %v1419
        %1421 = vdwg.mxu0
        %1422 = vst [vmem:[%s489] sm:$0x1] %v1420
        %s1423 = sand.u32 %s359, 1
        %s1424 = scalar_lea.sflag [#allocation4], %s1423
        %s1425 = sand.u32 %s359, 1
        %s1426 = scalar_lea.vmem [#allocation3], %s1425
        // Predicated region
        $region81: #{tpu_custom_call.1} parent=79 // pred_check
          %p1427 = pneg %p369
        $region82: #{tpu_custom_call.1} parent=79 // pred_check_branch
          %1429 = sbr.rel (%p1427) target = $region84
        $region83: #{tpu_custom_call.1} parent=79 // pred_region
          %1431 = vsyncadd %s1424, 0
          %s1432 = scalar_lea.hbm %s15, %s31
          %s1434 = sshll.u32 %s1426, 4
          %s1435 = int_to_ptr.vmem [resolvable:$true] %s1434
          %s1436 = sshll.u32 %s1432, 4
          %s1437 = int_to_ptr.hbm [resolvable:$true] %s1436
          %1439 = dma.vmem_to_hbm [thread:$0]  %s1435, 16, %s1437, %s1424
        $region84: #{tpu_custom_call.1} parent=79 // pred_fallthru
          _
      $region80: #{tpu_custom_call.1} parent=5 // pred_fallthru
        _
      %p1440 = scmp.le.s32.totalorder 2, %s26
      // Predicated region
      $region85: #{tpu_custom_call.1} parent=5 // pred_check
        %p1441 = pneg %p1440
      $region86: #{tpu_custom_call.1} parent=5 // pred_check_branch
        %1443 = sbr.rel (%p1441) target = $region88
      $region87: #{tpu_custom_call.1} parent=5 // pred_region
        %s1444 = ssub.s32 %s26, 2
        // Predicated region
        $region89: #{tpu_custom_call.1} parent=87 // pred_check
          %p1445 = pneg %p375
        $region90: #{tpu_custom_call.1} parent=87 // pred_check_branch
          %1447 = sbr.rel (%p1445) target = $region92
        $region91: #{tpu_custom_call.1} parent=87 // pred_region
          %s1448 = sand.u32 %s360, 1
          %s1449 = scalar_lea.sflag [#allocation4], %s1448
          %s1450 = sand.u32 %s360, 1
          %s1451 = scalar_lea.vmem [#allocation3], %s1450
          %1453 = dma.done %s1449, 16
        $region92: #{tpu_custom_call.1} parent=87 // pred_fallthru
          _
      $region88: #{tpu_custom_call.1} parent=5 // pred_fallthru
        _
    $region6: #{tpu_custom_call.1} parent=1 // loop_footer
      %s30 = sadd.s32 1, %s26
    $region7: #{tpu_custom_call.1} parent=1 // loop_footer_branch
      %25 = sbr.rel target = $region3
    $region8: #{tpu_custom_call.1} parent=1 // loop_exit
      _
    %1454 = vsyncpa [#allocation4], 1
    %s1455 = scalar_lea.sflag [#allocation4], 1
    %1456 = vsyncpa %s1455, 1

</llo_original>
